<compile_context>
chip_gen: v6e
topology: v6e:2x2x1
jax: 0.10.0
libtpu: 0.0.40
codegen_flags: <defaults>
</compile_context>

<pallas_src>
import jax
import jax.numpy as jnp
from jax.experimental import pallas as pl
from jax.experimental.pallas import tpu as pltpu


def _round_up(n, m):
    return -(-n // m) * m


# --------------------------------------------------------------------------- #
# Kernel: one grid step = NB batch rows, one lane-dense MXU matmul + bias.
# --------------------------------------------------------------------------- #
def _mini_network_kernel(x_ref, w_ref, b_ref, o_ref):
    acc = jnp.dot(x_ref[...].astype(w_ref.dtype), w_ref[...],
                  preferred_element_type=jnp.float32)
    o_ref[...] = (acc + b_ref[...]).astype(o_ref.dtype)


# --------------------------------------------------------------------------- #
# Wrapper-side exact affine composition of the whole network (done once, f32).
#
# Per batch element, with x as a (Ci, L) matrix:
#   y1  = W1_0 x E0 + W1_1 x E1 + b1 1^T          (conv1; E_b select/shift cols)
#   z1  = y1 Wl1^T + 1 bl1^T                      (lin1)
#   y2  = W2_0 z1 + W2_1 z1 S + b2 1^T            (conv2 on zero-padded z1;
#                                                   S = sub-diagonal shift)
#   out = y2 Wl2^T + 1 bl2^T                      (lin2)
# =>
#   out = sum_{a,b} (W2_a W1_b) x (E_b Wl1^T S^a Wl2^T) + b_eff
# --------------------------------------------------------------------------- #
def _compose_affine(params, L):
    w1, b1 = params["w1"], params["b1"]       # (P, Ci, 2), (P,)
    wl1, bl1 = params["wl1"], params["bl1"]   # (P, P), (P,)
    w2, b2 = params["w2"], params["b2"]       # (P, P, 2), (P,)
    wl2, bl2 = params["wl2"], params["bl2"]   # (Pout, P), (Pout,)
    P, Ci = w1.shape[0], w1.shape[1]
    Pout = wl2.shape[0]

    # Column-selection / shift matrices (f32, built once; tiny).
    Es = (jnp.eye(L, P, dtype=jnp.float32),          # E0[m,t] = d(m=t)
          jnp.eye(L, P, k=-1, dtype=jnp.float32))    # E1[m,t] = d(m=t+1)
    Ss = (jnp.eye(P, dtype=jnp.float32),             # identity
          jnp.eye(P, P, k=-1, dtype=jnp.float32))    # S[t+1,t]=1, last col 0 (zero pad)
    wl1t = wl1.T                                     # (P, P)   [t1, j]
    wl2t = wl2.T                                     # (P, Pout)[t, r]

    w_eff = jnp.zeros((Ci * L, P * Pout), jnp.float32)
    for a in (0, 1):
        for b in (0, 1):
            lhs = w2[:, :, a] @ w1[:, :, b]          # (P, Ci)   [q, c]
            rhs = Es[b] @ wl1t @ Ss[a] @ wl2t        # (L, Pout) [m, r]
            w_eff = w_eff + jnp.einsum("qc,mr->cmqr", lhs, rhs).reshape(
                Ci * L, P * Pout)

    # Bias propagation through the affine chain.
    bz = b1[:, None] * jnp.sum(wl1, axis=1)[None, :] + bl1[None, :]    # (P, P)
    b_eff = ((w2[:, :, 0] @ bz + w2[:, :, 1] @ bz @ Ss[1]) @ wl2t
             + b2[:, None] * jnp.sum(wl2, axis=1)[None, :]
             + bl2[None, :])                                           # (P, Pout)
    return w_eff, b_eff.reshape(1, P * Pout)


def mini_network_forward(x, params, *, block_batch=256,
                         compute_dtype=jnp.bfloat16):
    """x: (N, C_in, L) float32; returns (N, inter, out_planes) float32."""
    N, Ci, L = x.shape
    P = params["w1"].shape[0]
    Pout = params["wl2"].shape[0]

    if L - 1 != P:
        raise ValueError(
            f"lin1 requires conv1 output length L-1 == inter_planes "
            f"(got L-1={L - 1}, inter_planes={P})")

    K = Ci * L          # contraction dim of the composed operator (132 here)
    F = P * Pout        # lane-dense output width (512 here)

    # ---- composed operator (exact, f32), cast once to the MXU operand dtype ----
    w_eff, b_eff = _compose_affine(params, L)
    w_eff = w_eff.astype(compute_dtype)            # (K, F)
    b_eff = b_eff.astype(jnp.float32)              # (1, F), stays f32

    # ---- batch chunking: NB rows per grid step, NB a multiple of 8 ----------
    N8 = _round_up(N, 8)
    NB = min(_round_up(block_batch, 8), N8)
    # v7x has 2 TensorCores: prefer >=2 grid steps when the batch permits.
    if N8 // NB < 2 and N8 >= 16:
        NB = _round_up((N8 + 1) // 2, 8)
    G = -(-N // NB)                 # cdiv
    N_pad = G * NB

    x_flat = x.reshape(N, K)        # contiguous reshape, no concat of taps
    if N_pad != N:
        x_flat = jnp.concatenate(
            [x_flat, jnp.zeros((N_pad - N, K), x_flat.dtype)], axis=0)

    in_specs = [
        pl.BlockSpec((NB, K), lambda g: (g, 0)),    # activations: blocked over batch
        pl.BlockSpec((K, F), lambda g: (0, 0)),     # composed weights: resident
        pl.BlockSpec((1, F), lambda g: (0, 0)),     # composed bias: resident
    ]
    out_specs = pl.BlockSpec((NB, F), lambda g: (g, 0))

    out_flat = pl.pallas_call(
        _mini_network_kernel,
        out_shape=jax.ShapeDtypeStruct((N_pad, F), jnp.float32),
        grid=(G,),
        in_specs=in_specs,
        out_specs=out_specs,
        compiler_params=pltpu.CompilerParams(
            dimension_semantics=("parallel",)),
    )(x_flat, w_eff, b_eff)

    return out_flat[:N].reshape(N, P, Pout)


# --------------------------------------------------------------------------- #
# Init + pure-JAX layer-by-layer reference (correctness oracle).
# --------------------------------------------------------------------------- #
def init_params(key, in_planes, out_planes, inter_planes):
    """Deterministic PyTorch-default-style init U(-1/sqrt(fan_in), +1/sqrt(fan_in))."""
    ks = jax.random.split(key, 8)

    def u(k, shape, fan_in):
        bound = 1.0 / jnp.sqrt(float(fan_in))
        return jax.random.uniform(k, shape, jnp.float32, -bound, bound)

    P, Ci, Po = inter_planes, in_planes, out_planes
    return {
        "w1": u(ks[0], (P, Ci, 2), Ci * 2), "b1": u(ks[1], (P,), Ci * 2),
        "wl1": u(ks[2], (P, P), P),         "bl1": u(ks[3], (P,), P),
        "w2": u(ks[4], (P, P, 2), P * 2),   "b2": u(ks[5], (P,), P * 2),
        "wl2": u(ks[6], (Po, P), P),        "bl2": u(ks[7], (Po,), P),
    }


def reference_forward(x, params):
    """Pure-JAX f32 reference with identical semantics (layer by layer)."""
    w1, b1 = params["w1"], params["b1"]
    wl1, bl1 = params["wl1"], params["bl1"]
    w2, b2 = params["w2"], params["b2"]
    wl2, bl2 = params["wl2"], params["bl2"]
    N = x.shape[0]
    P = w1.shape[0]

    y1 = (jnp.einsum("pc,ncl->npl", w1[:, :, 0], x[:, :, :-1])
          + jnp.einsum("pc,ncl->npl", w1[:, :, 1], x[:, :, 1:])
          + b1[None, :, None])
    z1 = jnp.einsum("npl,jl->npj", y1, wl1) + bl1[None, None, :]
    z1_pad = jnp.concatenate([z1, jnp.zeros((N, P, 1), jnp.float32)], axis=-1)
    y2 = (jnp.einsum("qp,npl->nql", w2[:, :, 0], z1_pad[:, :, :-1])
          + jnp.einsum("qp,npl->nql", w2[:, :, 1], z1_pad[:, :, 1:])
          + b2[None, :, None])
    out = jnp.einsum("nql,jl->nqj", y2, wl2) + bl2[None, None, :]
    return out


if __name__ == "__main__":
    # Small shapes consistent with the module's forward:
    #   lin1 requires conv1's output length L-1 == inter_planes  =>  L = inter + 1
    N, Ci, P, Po = 2, 4, 32, 16
    L = P + 1  # 33

    key = jax.random.PRNGKey(0)
    kx, kp = jax.random.split(key)
    x = jax.random.normal(kx, (N, Ci, L), jnp.float32)
    params = init_params(kp, in_planes=Ci, out_planes=Po, inter_planes=P)

    ref = jax.block_until_ready(reference_forward(x, params))

    # Exact-math path (f32 MXU operands): tight check of the composed operator.
    out_f32 = jax.block_until_ready(
        mini_network_forward(x, params, compute_dtype=jnp.float32))
    assert out_f32.shape == (N, P, Po), out_f32.shape
    assert jnp.allclose(out_f32, ref, rtol=1e-3, atol=1e-3), (
        float(jnp.max(jnp.abs(out_f32 - ref))))

    # Default fast path (bf16 MXU operands, f32 accumulation / bias add).
    out = jax.block_until_ready(mini_network_forward(x, params))
    assert out.shape == (N, P, Po), out.shape
    assert jnp.allclose(out, ref, rtol=2e-2, atol=5e-2), (
        float(jnp.max(jnp.abs(out - ref))))

    # Larger odd batch: exercises multi-step grid (G >= 2, v7x split path)
    # and batch zero-padding.
    N2 = 20
    x2 = jax.random.normal(jax.random.PRNGKey(1), (N2, Ci, L), jnp.float32)
    ref2 = jax.block_until_ready(reference_forward(x2, params))
    out2 = jax.block_until_ready(mini_network_forward(x2, params))
    assert out2.shape == (N2, P, Po), out2.shape
    assert jnp.allclose(out2, ref2, rtol=2e-2, atol=5e-2), (
        float(jnp.max(jnp.abs(out2 - ref2))))

    print("KERNEL_OK")
</pallas_src>

<mosaic_0001>
module attributes {stable_mosaic.version = 11 : i64} {
  func.func @_mini_network_kernel(%arg0: i32, %arg1: memref<8x132xf32, #tpu.memory_space<vmem>>, %arg2: memref<132x512xf32, #tpu.memory_space<vmem>>, %arg3: memref<1x512xf32, #tpu.memory_space<vmem>>, %arg4: memref<8x512xf32, #tpu.memory_space<vmem>>) attributes {dimension_semantics = [#tpu.dimension_semantics<parallel>], iteration_bounds = array<i64: 1>, scalar_prefetch = 0 : i64, scratch_operands = 0 : i64, tpu.core_type = #tpu.core_type<tc>, window_params = [{transform_indices = @transform_0, window_bounds = array<i64: 8, 132>}, {pipeline_mode = #tpu.pipeline_mode<synchronous>, transform_indices = @transform_1, window_bounds = array<i64: 132, 512>}, {pipeline_mode = #tpu.pipeline_mode<synchronous>, transform_indices = @transform_2, window_bounds = array<i64: 1, 512>}, {transform_indices = @transform_3, window_bounds = array<i64: 8, 512>}]} {
    %c0 = arith.constant 0 : index
    %c0_0 = arith.constant 0 : index
    %0 = vector.load %arg1[%c0, %c0_0] : memref<8x132xf32, #tpu.memory_space<vmem>>, vector<8x132xf32>
    %c0_1 = arith.constant 0 : index
    %c0_2 = arith.constant 0 : index
    %1 = vector.load %arg2[%c0_1, %c0_2] : memref<132x512xf32, #tpu.memory_space<vmem>>, vector<132x512xf32>
    %cst = arith.constant dense<0.000000e+00> : vector<8x512xf32>
    %2 = tpu.matmul %0, %1, %cst {dimension_numbers = #tpu.dot_dimension_numbers<[1], [0], [0], [1], [0, 0, 1, 1], [], []>} : vector<8x132xf32>, vector<132x512xf32>, vector<8x512xf32> -> vector<8x512xf32>
    %c0_3 = arith.constant 0 : index
    %c0_4 = arith.constant 0 : index
    %3 = vector.load %arg3[%c0_3, %c0_4] : memref<1x512xf32, #tpu.memory_space<vmem>>, vector<1x512xf32>
    %4 = vector.broadcast %3 : vector<1x512xf32> to vector<8x512xf32>
    %5 = arith.addf %2, %4 : vector<8x512xf32>
    %c0_5 = arith.constant 0 : index
    %c0_6 = arith.constant 0 : index
    %6 = vector.load %arg4[%c0_5, %c0_6] : memref<8x512xf32, #tpu.memory_space<vmem>>, vector<8x512xf32>
    tpu.vector_store %arg4[%c0_5, %c0_6], %5 {strides = array<i32>} : memref<8x512xf32, #tpu.memory_space<vmem>>, vector<8x512xf32>,
    return
  }
  func.func @transform_0(%arg0: i32) -> (i32, i32) {
    %c0_i32 = arith.constant 0 : i32
    %c0_i32_0 = arith.constant 0 : i32
    return %arg0, %c0_i32 : i32, i32
  }
  func.func @transform_1(%arg0: i32) -> (i32, i32) {
    %c0_i32 = arith.constant 0 : i32
    %c0_i32_0 = arith.constant 0 : i32
    %c0_i32_1 = arith.constant 0 : i32
    return %c0_i32, %c0_i32_0 : i32, i32
  }
  func.func @transform_2(%arg0: i32) -> (i32, i32) {
    %c0_i32 = arith.constant 0 : i32
    %c0_i32_0 = arith.constant 0 : i32
    %c0_i32_1 = arith.constant 0 : i32
    return %c0_i32, %c0_i32_0 : i32, i32
  }
  func.func @transform_3(%arg0: i32) -> (i32, i32) {
    %c0_i32 = arith.constant 0 : i32
    %c0_i32_0 = arith.constant 0 : i32
    return %arg0, %c0_i32 : i32, i32
  }
}

</mosaic_0001>

<llo_original>
// kernel: tpu_custom_call.1
$region0: #{tpu_custom_call.1}
  #allocation0 [shape = 'u32[]', space=smem, size = 0x4, offset = 0x4, fixed_abs, tag = 'smem constant byte address 0x4 - core index']
  #allocation1 [shape = 'u32[144,128]{1,0:T(1,128)}', space=vmem, size = 0x12000, scoped, tag = 'internal scratch']
  %s0 = inlined_call_operand.hbm [shape: f32[8,132], index: 0, kind: input, shape index: {}]
  %s1 = inlined_call_operand.hbm [shape: f32[132,512], index: 1, kind: input, shape index: {}]
  %s2 = inlined_call_operand.hbm [shape: f32[1,512], index: 2, kind: input, shape index: {}]
  %s3 = inlined_call_operand.hbm [shape: f32[8,512], index: 3, kind: output, shape index: {}]
  %s4 = sld [smem:[#allocation0]]
  $region34: #{tpu_custom_call.1} parent=0
    _
  %s6 = ssub.s32 1, %s4
  %s7 = scalar_select 0, %s6, %s4
  $region1: #{tpu_custom_call.1} parent=0
    #allocation2 [shape = 'u8[8192]{0}', space=vmem, size = 0x2000, scoped, tag = 'input window, operand 0, single buffered']
    #allocation3 [shape = 's32[1]{0}', space=sflag, size = 0x4, scoped, tag = 'scoped memory for tpu_custom_call.1']
    #allocation4 [shape = 's32[1]{0}', space=sflag, size = 0x4, scoped, tag = 'scoped memory for tpu_custom_call.1']
    #allocation5 [shape = 'u8[278528]{0}', space=vmem, size = 0x44000, scoped, tag = 'input window, operand 1, single buffered']
    #allocation6 [shape = 's32[1]{0}', space=sflag, size = 0x4, scoped, tag = 'scoped memory for tpu_custom_call.1']
    #allocation7 [shape = 'u8[2048]{0}', space=vmem, size = 0x800, scoped, tag = 'input window, operand 2, single buffered']
    #allocation8 [shape = 'u8[16384]{0}', space=vmem, size = 0x4000, scoped, tag = 'output window, operand 0, single buffered']
    %8 = vsyncpa [#allocation3], 0
    %9 = vsyncpa [#allocation6], 0
    %10 = vsyncpa [#allocation4], 0
    // Predicated region
    $region2: #{tpu_custom_call.1} parent=1 // pred_check
      _
    $region3: #{tpu_custom_call.1} parent=1 // pred_check_branch
      %12 = sbr.rel (0) target = $region5
    $region4: #{tpu_custom_call.1} parent=1 // pred_region
      %s14 = ssub.s32 256, 256
      %15 = vsyncadd [#allocation3], %s14
      %s17 = sshll.u32 [#allocation2], 4
      %s18 = int_to_ptr.vmem [resolvable:$true] %s17
      %20 = dma.hbm_to_vmem [thread:$0]  %s0, 256, %s18, [#allocation3]
    $region5: #{tpu_custom_call.1} parent=1 // pred_fallthru
      _
    // Predicated region
    $region6: #{tpu_custom_call.1} parent=1 // pred_check
      _
    $region7: #{tpu_custom_call.1} parent=1 // pred_check_branch
      %22 = sbr.rel (0) target = $region9
    $region8: #{tpu_custom_call.1} parent=1 // pred_region
      %s24 = ssub.s32 8704, 8704
      %25 = vsyncadd [#allocation6], %s24
      %s26 = sshll.u32 [#allocation5], 4
      %s27 = int_to_ptr.vmem [resolvable:$true] %s26
      %32 = dma.hbm_to_vmem [thread:$0]  %s1, 8704, %s27, [#allocation6], 512, 512, 32
    $region9: #{tpu_custom_call.1} parent=1 // pred_fallthru
      _
    // Predicated region
    $region10: #{tpu_custom_call.1} parent=1 // pred_check
      _
    $region11: #{tpu_custom_call.1} parent=1 // pred_check_branch
      %34 = sbr.rel (0) target = $region13
    $region12: #{tpu_custom_call.1} parent=1 // pred_region
      %s36 = ssub.s32 64, 64
      %37 = vsyncadd [#allocation6], %s36
      %s39 = sshll.u32 [#allocation7], 4
      %s40 = int_to_ptr.vmem [resolvable:$true] %s39
      %42 = dma.hbm_to_vmem [thread:$0]  %s2, 64, %s40, [#allocation6]
    $region13: #{tpu_custom_call.1} parent=1 // pred_fallthru
      _
    // Predicated region
    $region14: #{tpu_custom_call.1} parent=1 // pred_check
      _
    $region15: #{tpu_custom_call.1} parent=1 // pred_check_branch
      %44 = sbr.rel (0) target = $region17
    $region16: #{tpu_custom_call.1} parent=1 // pred_region
      %45 = dma.done [#allocation3], 256
    $region17: #{tpu_custom_call.1} parent=1 // pred_fallthru
      _
    // Predicated region
    $region18: #{tpu_custom_call.1} parent=1 // pred_check
      _
    $region19: #{tpu_custom_call.1} parent=1 // pred_check_branch
      %47 = sbr.rel (0) target = $region21
    $region20: #{tpu_custom_call.1} parent=1 // pred_region
      %48 = dma.done [#allocation6], 8704
    $region21: #{tpu_custom_call.1} parent=1 // pred_fallthru
      _
    // Predicated region
    $region22: #{tpu_custom_call.1} parent=1 // pred_check
      _
    $region23: #{tpu_custom_call.1} parent=1 // pred_check_branch
      %50 = sbr.rel (0) target = $region25
    $region24: #{tpu_custom_call.1} parent=1 // pred_region
      %51 = dma.done [#allocation6], 64
    $region25: #{tpu_custom_call.1} parent=1 // pred_fallthru
      _
    %v52 = vld [vmem:[#allocation2] sm:$0xff]
    %v53 = vld [vmem:[#allocation2 + $0x8] sm:$0xff]
    %v54 = vld [vmem:[#allocation5] sm:$0xff]
    %v55 = vld [vmem:[#allocation5 + $0x8] sm:$0xff]
    %v56 = vld [vmem:[#allocation5 + $0x10] sm:$0xff]
    %v57 = vld [vmem:[#allocation5 + $0x18] sm:$0xff]
    %v58 = vld [vmem:[#allocation5 + $0x20] sm:$0xff]
    %v59 = vld [vmem:[#allocation5 + $0x28] sm:$0xff]
    %v60 = vld [vmem:[#allocation5 + $0x30] sm:$0xff]
    %v61 = vld [vmem:[#allocation5 + $0x38] sm:$0xff]
    %v62 = vld [vmem:[#allocation5 + $0x40] sm:$0xff]
    %v63 = vld [vmem:[#allocation5 + $0x48] sm:$0xff]
    %v64 = vld [vmem:[#allocation5 + $0x50] sm:$0xff]
    %v65 = vld [vmem:[#allocation5 + $0x58] sm:$0xff]
    %v66 = vld [vmem:[#allocation5 + $0x60] sm:$0xff]
    %v67 = vld [vmem:[#allocation5 + $0x68] sm:$0xff]
    %v68 = vld [vmem:[#allocation5 + $0x70] sm:$0xff]
    %v69 = vld [vmem:[#allocation5 + $0x78] sm:$0xff]
    %v70 = vld [vmem:[#allocation5 + $0x80] sm:$0xff]
    %v71 = vld [vmem:[#allocation5 + $0x88] sm:$0xff]
    %v72 = vld [vmem:[#allocation5 + $0x90] sm:$0xff]
    %v73 = vld [vmem:[#allocation5 + $0x98] sm:$0xff]
    %v74 = vld [vmem:[#allocation5 + $0xa0] sm:$0xff]
    %v75 = vld [vmem:[#allocation5 + $0xa8] sm:$0xff]
    %v76 = vld [vmem:[#allocation5 + $0xb0] sm:$0xff]
    %v77 = vld [vmem:[#allocation5 + $0xb8] sm:$0xff]
    %v78 = vld [vmem:[#allocation5 + $0xc0] sm:$0xff]
    %v79 = vld [vmem:[#allocation5 + $0xc8] sm:$0xff]
    %v80 = vld [vmem:[#allocation5 + $0xd0] sm:$0xff]
    %v81 = vld [vmem:[#allocation5 + $0xd8] sm:$0xff]
    %v82 = vld [vmem:[#allocation5 + $0xe0] sm:$0xff]
    %v83 = vld [vmem:[#allocation5 + $0xe8] sm:$0xff]
    %v84 = vld [vmem:[#allocation5 + $0xf0] sm:$0xff]
    %v85 = vld [vmem:[#allocation5 + $0xf8] sm:$0xff]
    %v86 = vld [vmem:[#allocation5 + $0x100] sm:$0xff]
    %v87 = vld [vmem:[#allocation5 + $0x108] sm:$0xff]
    %v88 = vld [vmem:[#allocation5 + $0x110] sm:$0xff]
    %v89 = vld [vmem:[#allocation5 + $0x118] sm:$0xff]
    %v90 = vld [vmem:[#allocation5 + $0x120] sm:$0xff]
    %v91 = vld [vmem:[#allocation5 + $0x128] sm:$0xff]
    %v92 = vld [vmem:[#allocation5 + $0x130] sm:$0xff]
    %v93 = vld [vmem:[#allocation5 + $0x138] sm:$0xff]
    %v94 = vld [vmem:[#allocation5 + $0x140] sm:$0xff]
    %v95 = vld [vmem:[#allocation5 + $0x148] sm:$0xff]
    %v96 = vld [vmem:[#allocation5 + $0x150] sm:$0xff]
    %v97 = vld [vmem:[#allocation5 + $0x158] sm:$0xff]
    %v98 = vld [vmem:[#allocation5 + $0x160] sm:$0xff]
    %v99 = vld [vmem:[#allocation5 + $0x168] sm:$0xff]
    %v100 = vld [vmem:[#allocation5 + $0x170] sm:$0xff]
    %v101 = vld [vmem:[#allocation5 + $0x178] sm:$0xff]
    %v102 = vld [vmem:[#allocation5 + $0x180] sm:$0xff]
    %v103 = vld [vmem:[#allocation5 + $0x188] sm:$0xff]
    %v104 = vld [vmem:[#allocation5 + $0x190] sm:$0xff]
    %v105 = vld [vmem:[#allocation5 + $0x198] sm:$0xff]
    %v106 = vld [vmem:[#allocation5 + $0x1a0] sm:$0xff]
    %v107 = vld [vmem:[#allocation5 + $0x1a8] sm:$0xff]
    %v108 = vld [vmem:[#allocation5 + $0x1b0] sm:$0xff]
    %v109 = vld [vmem:[#allocation5 + $0x1b8] sm:$0xff]
    %v110 = vld [vmem:[#allocation5 + $0x1c0] sm:$0xff]
    %v111 = vld [vmem:[#allocation5 + $0x1c8] sm:$0xff]
    %v112 = vld [vmem:[#allocation5 + $0x1d0] sm:$0xff]
    %v113 = vld [vmem:[#allocation5 + $0x1d8] sm:$0xff]
    %v114 = vld [vmem:[#allocation5 + $0x1e0] sm:$0xff]
    %v115 = vld [vmem:[#allocation5 + $0x1e8] sm:$0xff]
    %v116 = vld [vmem:[#allocation5 + $0x1f0] sm:$0xff]
    %v117 = vld [vmem:[#allocation5 + $0x1f8] sm:$0xff]
    %v118 = vld [vmem:[#allocation5 + $0x200] sm:$0xf]
    %v119 = vld [vmem:[#allocation5 + $0x208] sm:$0xf]
    %v120 = vld [vmem:[#allocation5 + $0x210] sm:$0xf]
    %v121 = vld [vmem:[#allocation5 + $0x218] sm:$0xf]
    %v122 = vld [vmem:[#allocation7] sm:$0xf]
    %v124 = vlaneseq
    %v125 = vshrl.u32 %v124, 7
    %v126 = vsub.s32 0, %v125
    %v127 = vrot.slane %v122, %v126
    %v128 = vlaneseq
    %v129 = vshrl.u32 %v128, 7
    %v130 = vsub.s32 1, %v129
    %v131 = vrot.slane %v122, %v130
    %v132 = vlaneseq
    %v133 = vshrl.u32 %v132, 7
    %v134 = vsub.s32 2, %v133
    %v135 = vrot.slane %v122, %v134
    %v136 = vlaneseq
    %v137 = vshrl.u32 %v136, 7
    %v138 = vsub.s32 3, %v137
    %v139 = vrot.slane %v122, %v138
    %vm144 = vcmask 31744
    %v146 = vsel %vm144, %v53, 0
    %vm148 = vcmask 1043456
    %v150 = vsel %vm148, %v118, 0
    %v153 = vsel %vm148, %v119, 0
    %v156 = vsel %vm148, %v120, 0
    %v159 = vsel %vm148, %v121, 0
    %161 = vmatprep.subr.mxu0 %v115
    %162 = vmatpush1.msra.mxu0 %v114
    %163 = vmatprep.subr.mxu0 %v111
    %164 = vmatpush1.msra.mxu0 %v110
    %165 = vmatprep.subr.mxu0 %v107
    %166 = vmatpush1.msra.mxu0 %v106
    %167 = vmatprep.subr.mxu0 %v103
    %168 = vmatpush1.msra.mxu0 %v102
    %169 = vmatprep.subr.mxu0 %v99
    %170 = vmatpush1.msra.mxu0 %v98
    %171 = vmatprep.subr.mxu0 %v95
    %172 = vmatpush1.msra.mxu0 %v94
    %173 = vmatprep.subr.mxu0 %v91
    %174 = vmatpush1.msra.mxu0 %v90
    %175 = vmatprep.subr.mxu0 %v87
    %176 = vmatpush1.msra.mxu0 %v86
    %177 = vmatprep.subr.mxu0 %v83
    %178 = vmatpush1.msra.mxu0 %v82
    %179 = vmatprep.subr.mxu0 %v79
    %180 = vmatpush1.msra.mxu0 %v78
    %181 = vmatprep.subr.mxu0 %v75
    %182 = vmatpush1.msra.mxu0 %v74
    %183 = vmatprep.subr.mxu0 %v71
    %184 = vmatpush1.msra.mxu0 %v70
    %185 = vmatprep.subr.mxu0 %v67
    %186 = vmatpush1.msra.mxu0 %v66
    %187 = vmatprep.subr.mxu0 %v63
    %188 = vmatpush1.msra.mxu0 %v62
    %189 = vmatprep.subr.mxu0 %v59
    %190 = vmatpush1.msra.mxu0 %v58
    %191 = vmatprep.subr.mxu0 %v55
    %192 = vmatpush1.msra.mxu0 %v54
    %193 = vmatprep.subr.mxu0 0.0
    %194 = vmatpush2.msra.mxu0 0.0
    %195 = vmatprep.subr.mxu0 0.0
    %196 = vmatpush2.msra.mxu0 0.0
    %197 = vmatprep.subr.mxu0 0.0
    %198 = vmatpush2.msra.mxu0 0.0
    %199 = vmatprep.subr.mxu0 0.0
    %200 = vmatpush2.msra.mxu0 0.0
    %201 = vmatprep.subr.mxu0 0.0
    %202 = vmatpush2.msra.mxu0 0.0
    %203 = vmatprep.subr.mxu0 0.0
    %204 = vmatpush2.msra.mxu0 0.0
    %205 = vmatprep.subr.mxu0 0.0
    %206 = vmatpush2.msra.mxu0 0.0
    %207 = vmatprep.subr.mxu0 0.0
    %208 = vmatpush2.msra.mxu0 0.0
    %209 = vmatprep.subr.mxu0 0.0
    %210 = vmatpush2.msra.mxu0 0.0
    %211 = vmatprep.subr.mxu0 0.0
    %212 = vmatpush2.msra.mxu0 0.0
    %213 = vmatprep.subr.mxu0 0.0
    %214 = vmatpush2.msra.mxu0 0.0
    %215 = vmatprep.subr.mxu0 0.0
    %216 = vmatpush2.msra.mxu0 0.0
    %217 = vmatprep.subr.mxu0 0.0
    %218 = vmatpush2.msra.mxu0 0.0
    %219 = vmatprep.subr.mxu0 0.0
    %220 = vmatpush2.msra.mxu0 0.0
    %221 = vmatprep.subr.mxu0 0.0
    %222 = vmatpush2.msra.mxu0 0.0
    %223 = vmatprep.subr.mxu0 %v153
    %224 = vmatpush2.msra.mxu0 %v150
    %225 = vmatprep.mubr.f32.mxu0 %v146
    %226 = vmatmul.mubr.f32.gmra.mxu0 %v52
    %v227 = vpop.f32.mrf.mxu0
    %v228 = vadd.f32 %v127, %v227
    %v229 = vpop.f32.mrf.mxu0
    %v230 = vadd.f32 %v131, %v229
    %231 = vdwg.mxu0
    %232 = vmatprep.subr.mxu0 %v117
    %233 = vmatpush1.msra.mxu0 %v116
    %234 = vmatprep.subr.mxu0 %v113
    %235 = vmatpush1.msra.mxu0 %v112
    %236 = vmatprep.subr.mxu0 %v109
    %237 = vmatpush1.msra.mxu0 %v108
    %238 = vmatprep.subr.mxu0 %v105
    %239 = vmatpush1.msra.mxu0 %v104
    %240 = vmatprep.subr.mxu0 %v101
    %241 = vmatpush1.msra.mxu0 %v100
    %242 = vmatprep.subr.mxu0 %v97
    %243 = vmatpush1.msra.mxu0 %v96
    %244 = vmatprep.subr.mxu0 %v93
    %245 = vmatpush1.msra.mxu0 %v92
    %246 = vmatprep.subr.mxu0 %v89
    %247 = vmatpush1.msra.mxu0 %v88
    %248 = vmatprep.subr.mxu0 %v85
    %249 = vmatpush1.msra.mxu0 %v84
    %250 = vmatprep.subr.mxu0 %v81
    %251 = vmatpush1.msra.mxu0 %v80
    %252 = vmatprep.subr.mxu0 %v77
    %253 = vmatpush1.msra.mxu0 %v76
    %254 = vmatprep.subr.mxu0 %v73
    %255 = vmatpush1.msra.mxu0 %v72
    %256 = vmatprep.subr.mxu0 %v69
    %257 = vmatpush1.msra.mxu0 %v68
    %258 = vmatprep.subr.mxu0 %v65
    %259 = vmatpush1.msra.mxu0 %v64
    %260 = vmatprep.subr.mxu0 %v61
    %261 = vmatpush1.msra.mxu0 %v60
    %262 = vmatprep.subr.mxu0 %v57
    %263 = vmatpush1.msra.mxu0 %v56
    %264 = vmatprep.subr.mxu0 0.0
    %265 = vmatpush2.msra.mxu0 0.0
    %266 = vmatprep.subr.mxu0 0.0
    %267 = vmatpush2.msra.mxu0 0.0
    %268 = vmatprep.subr.mxu0 0.0
    %269 = vmatpush2.msra.mxu0 0.0
    %270 = vmatprep.subr.mxu0 0.0
    %271 = vmatpush2.msra.mxu0 0.0
    %272 = vmatprep.subr.mxu0 0.0
    %273 = vmatpush2.msra.mxu0 0.0
    %274 = vmatprep.subr.mxu0 0.0
    %275 = vmatpush2.msra.mxu0 0.0
    %276 = vmatprep.subr.mxu0 0.0
    %277 = vmatpush2.msra.mxu0 0.0
    %278 = vmatprep.subr.mxu0 0.0
    %279 = vmatpush2.msra.mxu0 0.0
    %280 = vmatprep.subr.mxu0 0.0
    %281 = vmatpush2.msra.mxu0 0.0
    %282 = vmatprep.subr.mxu0 0.0
    %283 = vmatpush2.msra.mxu0 0.0
    %284 = vmatprep.subr.mxu0 0.0
    %285 = vmatpush2.msra.mxu0 0.0
    %286 = vmatprep.subr.mxu0 0.0
    %287 = vmatpush2.msra.mxu0 0.0
    %288 = vmatprep.subr.mxu0 0.0
    %289 = vmatpush2.msra.mxu0 0.0
    %290 = vmatprep.subr.mxu0 0.0
    %291 = vmatpush2.msra.mxu0 0.0
    %292 = vmatprep.subr.mxu0 0.0
    %293 = vmatpush2.msra.mxu0 0.0
    %294 = vmatprep.subr.mxu0 %v159
    %295 = vmatpush2.msra.mxu0 %v156
    %296 = vmatprep.mubr.f32.mxu0 %v146
    %297 = vmatmul.mubr.f32.gmra.mxu0 %v52
    %v298 = vpop.f32.mrf.mxu0
    %v299 = vadd.f32 %v135, %v298
    %v300 = vpop.f32.mrf.mxu0
    %v301 = vadd.f32 %v139, %v300
    %302 = vdwg.mxu0
    %303 = vst [vmem:[#allocation8] sm:$0xff] %v228
    %304 = vst [vmem:[#allocation8 + $0x8] sm:$0xff] %v230
    %305 = vst [vmem:[#allocation8 + $0x10] sm:$0xff] %v299
    %306 = vst [vmem:[#allocation8 + $0x18] sm:$0xff] %v301
    // Predicated region
    $region26: #{tpu_custom_call.1} parent=1 // pred_check
      _
    $region27: #{tpu_custom_call.1} parent=1 // pred_check_branch
      %308 = sbr.rel (0) target = $region29
    $region28: #{tpu_custom_call.1} parent=1 // pred_region
      %s310 = ssub.s32 512, 512
      %311 = vsyncadd [#allocation4], %s310
      %s313 = sshll.u32 [#allocation8], 4
      %s314 = int_to_ptr.vmem [resolvable:$true] %s313
      %316 = dma.vmem_to_hbm [thread:$0]  %s314, 512, %s3, [#allocation4]
    $region29: #{tpu_custom_call.1} parent=1 // pred_fallthru
      _
    // Predicated region
    $region30: #{tpu_custom_call.1} parent=1 // pred_check
      _
    $region31: #{tpu_custom_call.1} parent=1 // pred_check_branch
      %318 = sbr.rel (0) target = $region33
    $region32: #{tpu_custom_call.1} parent=1 // pred_region
      %319 = dma.done [#allocation4], 512
    $region33: #{tpu_custom_call.1} parent=1 // pred_fallthru
      _
    %320 = vsyncpa [#allocation3], 1
    %321 = vsyncpa [#allocation6], 1
    %322 = vsyncpa [#allocation4], 1

</llo_original>
